<compile_context>
chip_gen: v6e
topology: v6e:2x2x1
jax: 0.10.0
libtpu: 0.0.40
codegen_flags: <defaults>
</compile_context>

<pallas_src>
import math
import jax
import jax.numpy as jnp
from jax.experimental import pallas as pl
from jax.experimental.pallas import tpu as pltpu

# ---- feature-type tags (as in the PyTorch file) ----
ONE_HOT, POSITION, FLOAT, FORWARD, PASS, MAPPING = 1, 2, 3, 4, 5, 6

# ---- static config (small shapes) ----
N_CLASSES = 10          # OneHotEncoding n_classes
OH_DIM    = 16          # OneHotEncoding out_dim
PE_DIM    = 16          # PositionalEncoding d_model
MAX_LEN   = 64          # PositionalEncoding max_len
FLOAT_DIM = 16          # FloatEncoding out_dim
FWD_IN    = 8           # ForwardEncoding in_dim
FWD_OUT   = 16          # ForwardEncoding out_dim
PASS_DIM  = 4           # PassEncoding in_dim
VOCAB     = 32          # MappingEncoding vocab size
MAP_DIM   = 300         # MappingEncoding total emb dim (44+44+44+45+44+34+45)

TOTAL_IN  = 1 + 1 + 1 + FWD_IN + PASS_DIM + 1                           # 16
TOTAL_OUT = OH_DIM + PE_DIM + FLOAT_DIM + FWD_OUT + PASS_DIM + MAP_DIM  # 368

# input column offsets (x = [oh_idx, pe_idx, float, fwd(8), pass(4), map_idx])
C_OH, C_PE, C_FL, C_FW, C_PS, C_MP = 0, 1, 2, 3, 3 + FWD_IN, 3 + FWD_IN + PASS_DIM
# output column offsets
O_OH = 0
O_PE = O_OH + OH_DIM
O_FL = O_PE + PE_DIM
O_FW = O_FL + FLOAT_DIM
O_PS = O_FW + FWD_OUT
O_MP = O_PS + PASS_DIM

# fused LHS / RHS layout
K_PAD     = 128                      # 16 raw lanes + 107 one-hot/bias lanes + 5 pad
OUT_PAD   = 384                      # 368 padded to a multiple of 128
OH_BASE   = 0                        # one-hot segment bases inside the 112-lane iota
PE_BASE   = N_CLASSES                # 10
MP_BASE   = N_CLASSES + MAX_LEN      # 74
BIAS_LANE = MP_BASE + VOCAB          # 106 : always-1 lane carrying the fused bias
ROW_OH    = TOTAL_IN + OH_BASE       # RHS row offsets of the one-hot blocks
ROW_PE    = TOTAL_IN + PE_BASE
ROW_MP    = TOTAL_IN + MP_BASE
ROW_BIAS  = TOTAL_IN + BIAS_LANE     # 122

TM_DEFAULT = 1024                    # sweepable row tile (review: 512-2048)


def feature_encoding_kernel(x_ref, rhs_ref, out_ref):
    x = x_ref[...]                                          # (TM, 16) f32

    # Indices, clamped so out-of-range values cannot alias into another segment.
    oh_idx = jnp.clip(x[:, C_OH:C_OH + 1].astype(jnp.int32), 0, N_CLASSES - 1)
    pe_idx = jnp.clip(x[:, C_PE:C_PE + 1].astype(jnp.int32), 0, MAX_LEN - 1)
    mp_idx = jnp.clip(x[:, C_MP:C_MP + 1].astype(jnp.int32), 0, VOCAB - 1)

    # Combined one-hot over one 112-lane iota: [oh | pe | map | bias] segments.
    cid = jax.lax.broadcasted_iota(jnp.int32, (x.shape[0], K_PAD - TOTAL_IN), 1)
    onehot = ((cid == oh_idx + OH_BASE)
              | (cid == pe_idx + PE_BASE)
              | (cid == mp_idx + MP_BASE)
              | (cid == BIAS_LANE)).astype(jnp.float32)     # bias folded into always-1 lane

    # Fused LHS: raw x in the first 16 lanes (float/forward/pass rows of the block
    # diagonal RHS read them; index columns hit zero RHS rows).  bf16 operands,
    # f32 MXU accumulation (0/1 one-hot lanes stay exact in bf16).
    lhs = jnp.concatenate([x, onehot], axis=1).astype(jnp.bfloat16)   # (TM, 128) bf16

    # Single MXU pass; bias is already inside the matmul via the always-1 lane.
    y = jnp.dot(lhs, rhs_ref[...], preferred_element_type=jnp.float32)  # (TM, 384) f32

    # Selective ReLU via static lane mask (OH cols [0,16), FLOAT+FORWARD cols [32,64)).
    oc = jax.lax.broadcasted_iota(jnp.int32, y.shape, 1)
    relu_cols = (oc < O_PE) | ((oc >= O_FL) & (oc < O_PS))
    out_ref[...] = jnp.where(relu_cols, jnp.maximum(y, 0.0), y).astype(out_ref.dtype)


def build_fused_weights(oh_w, oh_b, pe, fl_w, fl_b, fw_w, fw_b, wv):
    """Block-diagonal RHS (128, 384) in bf16, with the bias fused into row ROW_BIAS."""
    rhs = jnp.zeros((K_PAD, OUT_PAD), jnp.float32)
    # rows fed by raw x lanes (index columns 0, 1, 15 stay zero rows)
    rhs = rhs.at[C_FL, O_FL:O_FL + FLOAT_DIM].set(fl_w[:, 0])
    rhs = rhs.at[C_FW:C_FW + FWD_IN, O_FW:O_FW + FWD_OUT].set(fw_w.T)
    rhs = rhs.at[C_PS:C_PS + PASS_DIM, O_PS:O_PS + PASS_DIM].set(jnp.eye(PASS_DIM, dtype=jnp.float32))
    # rows fed by the one-hot lanes
    rhs = rhs.at[ROW_OH:ROW_OH + N_CLASSES, O_OH:O_OH + OH_DIM].set(oh_w.T)
    rhs = rhs.at[ROW_PE:ROW_PE + MAX_LEN, O_PE:O_PE + PE_DIM].set(pe)
    rhs = rhs.at[ROW_MP:ROW_MP + VOCAB, O_MP:O_MP + MAP_DIM].set(wv)
    # fused bias row, driven by the always-1 LHS lane
    rhs = rhs.at[ROW_BIAS, O_OH:O_OH + OH_DIM].set(oh_b)
    rhs = rhs.at[ROW_BIAS, O_FL:O_FL + FLOAT_DIM].set(fl_b)
    rhs = rhs.at[ROW_BIAS, O_FW:O_FW + FWD_OUT].set(fw_b)
    return rhs.astype(jnp.bfloat16)


def _round8(n):
    return max(8, ((n + 7) // 8) * 8)


def feature_encoding(x, rhs, *, tm=TM_DEFAULT, out_dtype=jnp.float32):
    """Returns the PADDED (b_pad, 384) output slab; the consumer slices [:b, :368]
    lazily so the store-bound output is not re-read/re-written in HBM."""
    b = x.shape[0]
    # Sweepable tile, multiple of 8, capped so the parallel grid keeps >= 2 steps
    # when the batch allows (v7x: 2 TensorCores) and VMEM stays under default limits.
    tm_eff = max(8, (int(tm) // 8) * 8)
    tm_eff = min(tm_eff, _round8(-(-b // 2)))
    b_pad = -(-b // tm_eff) * tm_eff
    if b_pad != b:
        x = jnp.pad(x, ((0, b_pad - b), (0, 0)))          # pad rows use index 0 -> safe

    out = pl.pallas_call(
        feature_encoding_kernel,
        out_shape=jax.ShapeDtypeStruct((b_pad, OUT_PAD), out_dtype),
        grid_spec=pltpu.PrefetchScalarGridSpec(
            num_scalar_prefetch=0,
            grid=(b_pad // tm_eff,),
            in_specs=[
                pl.BlockSpec((tm_eff, TOTAL_IN), lambda i: (i, 0)),   # x rows, tiled
                pl.BlockSpec((K_PAD, OUT_PAD), lambda i: (0, 0)),     # fused RHS, VMEM-resident
            ],
            out_specs=pl.BlockSpec((tm_eff, OUT_PAD), lambda i: (i, 0)),
        ),
        compiler_params=pltpu.CompilerParams(
            dimension_semantics=("parallel",)),
    )(x, rhs)
    return out


def make_params(key):
    k = jax.random.split(key, 6)
    # OneHotEncoding linear: W (OH_DIM, N_CLASSES), b (OH_DIM,)
    oh_w = jax.random.normal(k[0], (OH_DIM, N_CLASSES), jnp.float32) * 0.1
    oh_b = jax.random.normal(k[1], (OH_DIM,), jnp.float32) * 0.1
    # PositionalEncoding table (interleaved sin/cos, as in the PyTorch buffer)
    position = jnp.arange(MAX_LEN, dtype=jnp.float32)[:, None]
    div_term = jnp.exp(jnp.arange(0, PE_DIM, 2, dtype=jnp.float32)
                       * (-math.log(10000.0) / PE_DIM))
    pe = jnp.stack([jnp.sin(position * div_term),
                    jnp.cos(position * div_term)], axis=-1).reshape(MAX_LEN, PE_DIM)
    # FloatEncoding linear: W (FLOAT_DIM, 1), b (FLOAT_DIM,)
    fl_w = jax.random.normal(k[2], (FLOAT_DIM, 1), jnp.float32) * 0.1
    fl_b = jax.random.normal(k[3], (FLOAT_DIM,), jnp.float32) * 0.1
    # ForwardEncoding linear: W (FWD_OUT, FWD_IN), b (FWD_OUT,)
    fw_w = jax.random.normal(k[4], (FWD_OUT, FWD_IN), jnp.float32) * 0.1
    fw_b = jax.random.normal(k[5], (FWD_OUT,), jnp.float32) * 0.1
    # MappingEncoding pretrained word vectors (VOCAB, MAP_DIM).
    # NOTE: the 7-way device split in MappingEncoding concatenates back to the
    # full row, so a single-table gather is mathematically identical.
    wv = jax.random.normal(jax.random.PRNGKey(123), (VOCAB, MAP_DIM), jnp.float32)
    return oh_w, oh_b, pe, fl_w, fl_b, fw_w, fw_b, wv


def reference(x, oh_w, oh_b, pe, fl_w, fl_b, fw_w, fw_b, wv):
    oh_idx = jnp.clip(x[:, C_OH].astype(jnp.int32), 0, N_CLASSES - 1)
    pe_idx = jnp.clip(x[:, C_PE].astype(jnp.int32), 0, MAX_LEN - 1)
    mp_idx = jnp.clip(x[:, C_MP].astype(jnp.int32), 0, VOCAB - 1)
    oh = jax.nn.one_hot(oh_idx, N_CLASSES, dtype=jnp.float32)
    r_oh = jax.nn.relu(oh @ oh_w.T + oh_b)
    r_pe = pe[pe_idx]
    r_fl = jax.nn.relu(x[:, C_FL:C_FL + 1] @ fl_w.T + fl_b)
    r_fw = jax.nn.relu(x[:, C_FW:C_FW + FWD_IN] @ fw_w.T + fw_b)
    r_ps = x[:, C_PS:C_PS + PASS_DIM]
    r_mp = wv[mp_idx]
    return jnp.concatenate([r_oh, r_pe, r_fl, r_fw, r_ps, r_mp], axis=1)


if __name__ == "__main__":
    key = jax.random.PRNGKey(0)
    k_idx, k_pe, k_fl, k_fw, k_ps, k_par = jax.random.split(key, 6)

    oh_w, oh_b, pe, fl_w, fl_b, fw_w, fw_b, wv = make_params(k_par)

    # Batched input (indices stored as floats, as PyTorch does .long() on them).
    B = 256
    oh_col = jax.random.randint(k_idx, (B, 1), 0, N_CLASSES).astype(jnp.float32)
    pe_col = jax.random.randint(k_pe, (B, 1), 0, MAX_LEN).astype(jnp.float32)
    fl_col = jax.random.normal(k_fl, (B, 1), jnp.float32)
    fw_col = jax.random.normal(k_fw, (B, FWD_IN), jnp.float32)
    ps_col = jax.random.normal(k_ps, (B, PASS_DIM), jnp.float32)
    mp_col = jax.random.randint(jax.random.PRNGKey(7), (B, 1), 0, VOCAB).astype(jnp.float32)
    x = jnp.concatenate([oh_col, pe_col, fl_col, fw_col, ps_col, mp_col], axis=1)
    assert x.shape == (B, TOTAL_IN)

    rhs = build_fused_weights(oh_w, oh_b, pe, fl_w, fl_b, fw_w, fw_b, wv)

    # f32-output run (default contract): padded slab, consumer slices lazily.
    out_pad = feature_encoding(x, rhs)
    out_pad = jax.block_until_ready(out_pad)
    out = out_pad[:B, :TOTAL_OUT]

    # Tight check: kernel uses bf16 operands with f32 accumulation, so compare
    # against the reference evaluated with bf16-rounded operands.
    _r = lambda a: a.astype(jnp.bfloat16).astype(jnp.float32)
    ref_bf = reference(_r(x), _r(oh_w), _r(oh_b), _r(pe), _r(fl_w), _r(fl_b),
                       _r(fw_w), _r(fw_b), _r(wv))
    assert out.shape == (B, TOTAL_OUT)
    assert jnp.allclose(out, ref_bf, atol=1e-5, rtol=1e-5)

    # Loose sanity check against the original full-f32 module semantics.
    ref_f32 = reference(x, oh_w, oh_b, pe, fl_w, fl_b, fw_w, fw_b, wv)
    assert jnp.allclose(out, ref_f32, atol=2e-2, rtol=2e-2)

    # Optional bf16-output path (halves the dominant HBM write, per review).
    out_bf16 = feature_encoding(x, rhs, out_dtype=jnp.bfloat16)
    out_bf16 = jax.block_until_ready(out_bf16)
    assert out_bf16.dtype == jnp.bfloat16
    assert jnp.allclose(out_bf16[:B, :TOTAL_OUT].astype(jnp.float32), ref_bf,
                        atol=2e-2, rtol=2e-2)

    print("KERNEL_OK")
</pallas_src>

<mosaic_0001>
module attributes {stable_mosaic.version = 11 : i64} {
  func.func @feature_encoding_kernel(%arg0: i32, %arg1: memref<128x16xf32, #tpu.memory_space<vmem>>, %arg2: memref<128x384xbf16, #tpu.memory_space<vmem>>, %arg3: memref<128x384xf32, #tpu.memory_space<vmem>>) attributes {dimension_semantics = [#tpu.dimension_semantics<parallel>], iteration_bounds = array<i64: 2>, scalar_prefetch = 0 : i64, scratch_operands = 0 : i64, tpu.core_type = #tpu.core_type<tc>, window_params = [{transform_indices = @transform_0, window_bounds = array<i64: 128, 16>}, {pipeline_mode = #tpu.pipeline_mode<synchronous>, transform_indices = @transform_1, window_bounds = array<i64: 128, 384>}, {transform_indices = @transform_2, window_bounds = array<i64: 128, 384>}]} {
    %c0 = arith.constant 0 : index
    %c0_0 = arith.constant 0 : index
    %0 = vector.load %arg1[%c0, %c0_0] : memref<128x16xf32, #tpu.memory_space<vmem>>, vector<128x16xf32>
    %1 = vector.extract_strided_slice %0 {offsets = [0, 0], sizes = [128, 1], strides = [1, 1]} : vector<128x16xf32> to vector<128x1xf32>
    %2 = arith.fptosi %1 : vector<128x1xf32> to vector<128x1xi32>
    %c0_i32 = arith.constant 0 : i32
    %c9_i32 = arith.constant 9 : i32
    %3 = vector.broadcast %c0_i32 : i32 to vector<128x1xi32>
    %4 = arith.maxsi %3, %2 : vector<128x1xi32>
    %5 = vector.broadcast %c9_i32 : i32 to vector<128x1xi32>
    %6 = arith.minsi %5, %4 : vector<128x1xi32>
    %7 = vector.extract_strided_slice %0 {offsets = [0, 1], sizes = [128, 1], strides = [1, 1]} : vector<128x16xf32> to vector<128x1xf32>
    %8 = arith.fptosi %7 : vector<128x1xf32> to vector<128x1xi32>
    %c0_i32_1 = arith.constant 0 : i32
    %c63_i32 = arith.constant 63 : i32
    %9 = vector.broadcast %c0_i32_1 : i32 to vector<128x1xi32>
    %10 = arith.maxsi %9, %8 : vector<128x1xi32>
    %11 = vector.broadcast %c63_i32 : i32 to vector<128x1xi32>
    %12 = arith.minsi %11, %10 : vector<128x1xi32>
    %13 = vector.extract_strided_slice %0 {offsets = [0, 15], sizes = [128, 1], strides = [1, 1]} : vector<128x16xf32> to vector<128x1xf32>
    %14 = arith.fptosi %13 : vector<128x1xf32> to vector<128x1xi32>
    %c0_i32_2 = arith.constant 0 : i32
    %c31_i32 = arith.constant 31 : i32
    %15 = vector.broadcast %c0_i32_2 : i32 to vector<128x1xi32>
    %16 = arith.maxsi %15, %14 : vector<128x1xi32>
    %17 = vector.broadcast %c31_i32 : i32 to vector<128x1xi32>
    %18 = arith.minsi %17, %16 : vector<128x1xi32>
    %19 = tpu.iota {dimensions = array<i32: 1>} : vector<128x112xi32>
    %c0_i32_3 = arith.constant 0 : i32
    %20 = vector.broadcast %c0_i32_3 : i32 to vector<128x1xi32>
    %21 = arith.addi %6, %20 : vector<128x1xi32>
    %22 = vector.broadcast %21 : vector<128x1xi32> to vector<128x112xi32>
    %23 = arith.cmpi eq, %19, %22 : vector<128x112xi32>
    %c10_i32 = arith.constant 10 : i32
    %24 = vector.broadcast %c10_i32 : i32 to vector<128x1xi32>
    %25 = arith.addi %12, %24 : vector<128x1xi32>
    %26 = vector.broadcast %25 : vector<128x1xi32> to vector<128x112xi32>
    %27 = arith.cmpi eq, %19, %26 : vector<128x112xi32>
    %28 = arith.ori %23, %27 : vector<128x112xi1>
    %c74_i32 = arith.constant 74 : i32
    %29 = vector.broadcast %c74_i32 : i32 to vector<128x1xi32>
    %30 = arith.addi %18, %29 : vector<128x1xi32>
    %31 = vector.broadcast %30 : vector<128x1xi32> to vector<128x112xi32>
    %32 = arith.cmpi eq, %19, %31 : vector<128x112xi32>
    %33 = arith.ori %28, %32 : vector<128x112xi1>
    %c106_i32 = arith.constant 106 : i32
    %34 = vector.broadcast %c106_i32 : i32 to vector<128x112xi32>
    %35 = arith.cmpi eq, %19, %34 : vector<128x112xi32>
    %36 = arith.ori %33, %35 : vector<128x112xi1>
    %37 = arith.extui %36 : vector<128x112xi1> to vector<128x112xi32>
    %38 = arith.sitofp %37 : vector<128x112xi32> to vector<128x112xf32>
    %39 = tpu.concatenate %0, %38 in 1 : vector<128x16xf32>, vector<128x112xf32> -> vector<128x128xf32>
    %40 = arith.truncf %39 : vector<128x128xf32> to vector<128x128xbf16>
    %c0_4 = arith.constant 0 : index
    %c0_5 = arith.constant 0 : index
    %41 = vector.load %arg2[%c0_4, %c0_5] : memref<128x384xbf16, #tpu.memory_space<vmem>>, vector<128x384xbf16>
    %cst = arith.constant dense<0.000000e+00> : vector<128x384xf32>
    %42 = tpu.matmul %40, %41, %cst {dimension_numbers = #tpu.dot_dimension_numbers<[1], [0], [0], [1], [0, 0, 1, 1], [], []>} : vector<128x128xbf16>, vector<128x384xbf16>, vector<128x384xf32> -> vector<128x384xf32>
    %43 = tpu.iota {dimensions = array<i32: 1>} : vector<128x384xi32>
    %c16_i32 = arith.constant 16 : i32
    %44 = vector.broadcast %c16_i32 : i32 to vector<128x384xi32>
    %45 = arith.cmpi slt, %43, %44 : vector<128x384xi32>
    %c32_i32 = arith.constant 32 : i32
    %46 = vector.broadcast %c32_i32 : i32 to vector<128x384xi32>
    %47 = arith.cmpi sge, %43, %46 : vector<128x384xi32>
    %c64_i32 = arith.constant 64 : i32
    %48 = vector.broadcast %c64_i32 : i32 to vector<128x384xi32>
    %49 = arith.cmpi slt, %43, %48 : vector<128x384xi32>
    %50 = arith.andi %47, %49 : vector<128x384xi1>
    %51 = arith.ori %45, %50 : vector<128x384xi1>
    %cst_6 = arith.constant 0.000000e+00 : f32
    %52 = vector.broadcast %cst_6 : f32 to vector<128x384xf32>
    %53 = arith.maximumf %42, %52 : vector<128x384xf32>
    %54 = arith.select %51, %53, %42 : vector<128x384xi1>, vector<128x384xf32>
    %c0_7 = arith.constant 0 : index
    %c0_8 = arith.constant 0 : index
    %55 = vector.load %arg3[%c0_7, %c0_8] : memref<128x384xf32, #tpu.memory_space<vmem>>, vector<128x384xf32>
    tpu.vector_store %arg3[%c0_7, %c0_8], %54 {strides = array<i32>} : memref<128x384xf32, #tpu.memory_space<vmem>>, vector<128x384xf32>,
    return
  }
  func.func @transform_0(%arg0: i32) -> (i32, i32) {
    %c0_i32 = arith.constant 0 : i32
    %c0_i32_0 = arith.constant 0 : i32
    return %arg0, %c0_i32 : i32, i32
  }
  func.func @transform_1(%arg0: i32) -> (i32, i32) {
    %c0_i32 = arith.constant 0 : i32
    %c0_i32_0 = arith.constant 0 : i32
    %c0_i32_1 = arith.constant 0 : i32
    return %c0_i32, %c0_i32_0 : i32, i32
  }
  func.func @transform_2(%arg0: i32) -> (i32, i32) {
    %c0_i32 = arith.constant 0 : i32
    %c0_i32_0 = arith.constant 0 : i32
    return %arg0, %c0_i32 : i32, i32
  }
}

</mosaic_0001>

<llo_original>
// kernel: tpu_custom_call.1
$region0: #{tpu_custom_call.1}
  #allocation0 [shape = 'u32[]', space=smem, size = 0x4, offset = 0x4, fixed_abs, tag = 'smem constant byte address 0x4 - core index']
  #allocation1 [shape = 'u32[144,128]{1,0:T(1,128)}', space=vmem, size = 0x12000, scoped, tag = 'internal scratch']
  %s0 = inlined_call_operand.vmem [shape: f32[256,16], index: 0, kind: input, shape index: {}]
  %s1 = inlined_call_operand.vmem [shape: bf16[128,384], index: 1, kind: input, shape index: {}]
  %s2 = inlined_call_operand.hbm [shape: f32[256,384], index: 2, kind: output, shape index: {}]
  %s3 = sld [smem:[#allocation0]]
  $region41: #{tpu_custom_call.1} parent=0
    _
  %s5 = ssub.s32 1, %s3
  %s6 = scalar_select 0, %s5, %s3
  $region1: #{tpu_custom_call.1} parent=0
    #allocation2 [shape = 'u8[393216]{0}', space=vmem, size = 0x60000, scoped, tag = 'output window, operand 0']
    #allocation3 [shape = 's32[2]{0}', space=sflag, size = 0x8, scoped, tag = 'scoped memory for tpu_custom_call.1']
    %7 = vsyncpa [#allocation3], 0
    %s8 = scalar_lea.sflag [#allocation3], 1
    %9 = vsyncpa %s8, 0
    loop: start=0, step=1, limit=4
    $region2: #{tpu_custom_call.1} parent=1 // loop_pre_header
      _
    $region3: #{tpu_custom_call.1} parent=1 // loop_header
      %s11 = sphi 0, %s15
      %p12 = scmp.ge.s32.totalorder %s11, 4
      %s21 = sphi 0, %s23
      %s24 = sphi 0, %s21
      %s25 = sphi 0, %s24
      %s41 = sphi 0, %s25
      %s45 = sphi 0, %s45
      %s47 = sphi 0, %s45
      %s48 = sphi 0, %s47
      %s62 = sphi 0, %s48
      %s68 = sphi 0, %s70
      %s71 = sphi 0, %s68
      %s72 = sphi 0, %s71
      %s88 = sphi 0, %s72
    $region4: #{tpu_custom_call.1} parent=1 // loop_header_branch
      %14 = sbr.rel (%p12) target = $region8
    $region5: #{tpu_custom_call.1} parent=1 // loop_body
      %s16 = ssub.s32 %s11, 1
      %s17 = ssub.s32 %s11, 2
      %s18 = sadd.s32 %s11, 1
      %s19 = ssub.s32 %s11, %s18
      %p20 = scmp.eq.s32.totalorder %s19, 0
      %s22 = sadd.s32 %s21, 1
      %s23 = scalar_select %p20, %s21, %s22
      %p26 = pneg %p20
      %p27 = scmp.eq.s32.totalorder %s11, 1
      %p28 = por %p26, %p27
      %p29 = scmp.ne.s32.totalorder %s21, %s24
      %p30 = scmp.eq.s32.totalorder %s11, 0
      %p31 = por %p29, %p30
      %p32 = scmp.ne.s32.totalorder %s21, %s24
      %p33 = scmp.eq.s32.totalorder %s16, 1
      %p34 = por %p32, %p33
      %p35 = scmp.ne.s32.totalorder %s24, %s25
      %p36 = scmp.eq.s32.totalorder %s16, 0
      %p37 = por %p35, %p36
      %p38 = scmp.ne.s32.totalorder %s24, %s25
      %p39 = scmp.eq.s32.totalorder %s17, 1
      %p40 = por %p38, %p39
      %p42 = scmp.ne.s32.totalorder %s25, %s41
      %p43 = scmp.eq.s32.totalorder %s17, 0
      %p44 = por %p42, %p43
      %s46 = sadd.s32 %s45, 1
      %p49 = scmp.eq.s32.totalorder %s11, 1
      %p50 = scmp.ne.s32.totalorder %s45, %s47
      %p51 = scmp.eq.s32.totalorder %s11, 0
      %p52 = por %p50, %p51
      %p53 = scmp.ne.s32.totalorder %s45, %s47
      %p54 = scmp.eq.s32.totalorder %s16, 1
      %p55 = por %p53, %p54
      %p56 = scmp.ne.s32.totalorder %s47, %s48
      %p57 = scmp.eq.s32.totalorder %s16, 0
      %p58 = por %p56, %p57
      %p59 = scmp.ne.s32.totalorder %s47, %s48
      %p60 = scmp.eq.s32.totalorder %s17, 1
      %p61 = por %p59, %p60
      %p63 = scmp.ne.s32.totalorder %s48, %s62
      %p64 = scmp.eq.s32.totalorder %s17, 0
      %p65 = por %p63, %p64
      %s66 = ssub.s32 %s11, %s18
      %p67 = scmp.eq.s32.totalorder %s66, 0
      %s69 = sadd.s32 %s68, 1
      %s70 = scalar_select %p67, %s68, %s69
      %p73 = pneg %p67
      %p74 = scmp.eq.s32.totalorder %s11, 1
      %p75 = por %p73, %p74
      %p76 = scmp.ne.s32.totalorder %s68, %s71
      %p77 = scmp.eq.s32.totalorder %s11, 0
      %p78 = por %p76, %p77
      %p79 = scmp.ne.s32.totalorder %s68, %s71
      %p80 = scmp.eq.s32.totalorder %s16, 1
      %p81 = por %p79, %p80
      %p82 = scmp.ne.s32.totalorder %s71, %s72
      %p83 = scmp.eq.s32.totalorder %s16, 0
      %p84 = por %p82, %p83
      %p85 = scmp.ne.s32.totalorder %s71, %s72
      %p86 = scmp.eq.s32.totalorder %s17, 1
      %p87 = por %p85, %p86
      %p89 = scmp.ne.s32.totalorder %s72, %s88
      %p90 = scmp.eq.s32.totalorder %s17, 0
      %p91 = por %p89, %p90
      %p92 = scmp.le.s32.totalorder 1, %s11
      %p93 = scmp.lt.s32.totalorder %s11, 3
      %p94 = pnand %p92, %p93
      %p95 = pneg %p94
      // Predicated region
      $region9: #{tpu_custom_call.1} parent=5 // pred_check
        _
      $region10: #{tpu_custom_call.1} parent=5 // pred_check_branch
        %97 = sbr.rel (%p94) target = $region12
      $region11: #{tpu_custom_call.1} parent=5 // pred_region
        %s98 = ssub.s32 %s11, 1
        // Predicated region
        $region13: #{tpu_custom_call.1} parent=11 // pred_check
          %p99 = pneg %p58
        $region14: #{tpu_custom_call.1} parent=11 // pred_check_branch
          %101 = sbr.rel (%p99) target = $region16
        $region15: #{tpu_custom_call.1} parent=11 // pred_region
          _
        $region16: #{tpu_custom_call.1} parent=11 // pred_fallthru
          _
      $region12: #{tpu_custom_call.1} parent=5 // pred_fallthru
        _
      %p102 = scmp.lt.s32.totalorder %s11, 2
      // Predicated region
      $region17: #{tpu_custom_call.1} parent=5 // pred_check
        %p103 = pneg %p102
      $region18: #{tpu_custom_call.1} parent=5 // pred_check_branch
        %105 = sbr.rel (%p103) target = $region20
      $region19: #{tpu_custom_call.1} parent=5 // pred_region
        // Predicated region
        $region21: #{tpu_custom_call.1} parent=19 // pred_check
          %p106 = pneg %p31
        $region22: #{tpu_custom_call.1} parent=19 // pred_check_branch
          %108 = sbr.rel (%p106) target = $region24
        $region23: #{tpu_custom_call.1} parent=19 // pred_region
          %s109 = smul.u32 16, %s11
          %p110 = scmp.lt.s32.totalorder %s109, 31
          %s111 = scalar_select %p110, %s109, 31
          %s112 = smul.addr %s111, 8
          %s113 = scalar_lea.vmem %s0, %s112
          %s114 = smul.u32 16, %s11
        $region24: #{tpu_custom_call.1} parent=19 // pred_fallthru
          _
      $region20: #{tpu_custom_call.1} parent=5 // pred_fallthru
        _
      %p115 = scmp.le.s32.totalorder 1, %s11
      %p116 = scmp.lt.s32.totalorder %s11, 3
      %p117 = pnand %p115, %p116
      %p118 = pneg %p117
      // Predicated region
      $region25: #{tpu_custom_call.1} parent=5 // pred_check
        _
      $region26: #{tpu_custom_call.1} parent=5 // pred_check_branch
        %120 = sbr.rel (%p117) target = $region28
      $region27: #{tpu_custom_call.1} parent=5 // pred_region
        %s121 = ssub.s32 %s11, 1
        %s122 = smul.u32 16, %s16
        %p123 = scmp.lt.s32.totalorder %s122, 31
        %s124 = scalar_select %p123, %s122, 31
        %s125 = smul.addr %s124, 8
        %s126 = scalar_lea.vmem %s0, %s125
        %p127 = pneg %p37
        %p128 = pneg %p34
        %p129 = pneg %p58
        %p130 = pneg %p55
        %p131 = pneg %p84
        %p132 = pneg %p81
        %s133 = sand.u32 %s71, 1
        %s134 = scalar_lea.sflag [#allocation3], %s133
        %s135 = sand.u32 %s71, 1
        %s136 = smul.addr %s135, 384
        %s137 = scalar_lea.vmem [#allocation2], %s136
        %s138 = smul.u32 16, %s16
        %p139 = scmp.lt.s32.totalorder %s138, 31
        %s140 = scalar_select %p139, %s138, 31
        %s141 = smul.addr %s140, 8
        %s142 = scalar_lea.vmem %s0, %s141
        %s143 = smul.u32 16, %s16
        %s144 = smul.u32 16, %s16
        %v146 = vld [vmem:[%s142] sm:$0xff]
        %v147 = vld [vmem:[%s142 + $0x8] sm:$0xff]
        %v148 = vld [vmem:[%s142 + $0x10] sm:$0xff]
        %v149 = vld [vmem:[%s142 + $0x18] sm:$0xff]
        %v150 = vld [vmem:[%s142 + $0x20] sm:$0xff]
        %v151 = vld [vmem:[%s142 + $0x28] sm:$0xff]
        %v152 = vld [vmem:[%s142 + $0x30] sm:$0xff]
        %v153 = vld [vmem:[%s142 + $0x38] sm:$0xff]
        %v154 = vld [vmem:[%s142 + $0x40] sm:$0xff]
        %v155 = vld [vmem:[%s142 + $0x48] sm:$0xff]
        %v156 = vld [vmem:[%s142 + $0x50] sm:$0xff]
        %v157 = vld [vmem:[%s142 + $0x58] sm:$0xff]
        %v158 = vld [vmem:[%s142 + $0x60] sm:$0xff]
        %v159 = vld [vmem:[%s142 + $0x68] sm:$0xff]
        %v160 = vld [vmem:[%s142 + $0x70] sm:$0xff]
        %v161 = vld [vmem:[%s142 + $0x78] sm:$0xff]
        %v162 = vcvt.f32.s32.to.zero.pseudo %v146
        %v163 = vcvt.f32.s32.to.zero.pseudo %v147
        %v164 = vcvt.f32.s32.to.zero.pseudo %v148
        %v165 = vcvt.f32.s32.to.zero.pseudo %v149
        %v166 = vcvt.f32.s32.to.zero.pseudo %v150
        %v167 = vcvt.f32.s32.to.zero.pseudo %v151
        %v168 = vcvt.f32.s32.to.zero.pseudo %v152
        %v169 = vcvt.f32.s32.to.zero.pseudo %v153
        %v170 = vcvt.f32.s32.to.zero.pseudo %v154
        %v171 = vcvt.f32.s32.to.zero.pseudo %v155
        %v172 = vcvt.f32.s32.to.zero.pseudo %v156
        %v173 = vcvt.f32.s32.to.zero.pseudo %v157
        %v174 = vcvt.f32.s32.to.zero.pseudo %v158
        %v175 = vcvt.f32.s32.to.zero.pseudo %v159
        %v176 = vcvt.f32.s32.to.zero.pseudo %v160
        %v177 = vcvt.f32.s32.to.zero.pseudo %v161
        %vm178 = vcmp.gt.s32.totalorder %v162, 0
        %v179 = vsel %vm178, %v162, 0
        %vm180 = vcmp.gt.s32.totalorder %v163, 0
        %v181 = vsel %vm180, %v163, 0
        %vm182 = vcmp.gt.s32.totalorder %v164, 0
        %v183 = vsel %vm182, %v164, 0
        %vm184 = vcmp.gt.s32.totalorder %v165, 0
        %v185 = vsel %vm184, %v165, 0
        %vm186 = vcmp.gt.s32.totalorder %v166, 0
        %v187 = vsel %vm186, %v166, 0
        %vm188 = vcmp.gt.s32.totalorder %v167, 0
        %v189 = vsel %vm188, %v167, 0
        %vm190 = vcmp.gt.s32.totalorder %v168, 0
        %v191 = vsel %vm190, %v168, 0
        %vm192 = vcmp.gt.s32.totalorder %v169, 0
        %v193 = vsel %vm192, %v169, 0
        %vm194 = vcmp.gt.s32.totalorder %v170, 0
        %v195 = vsel %vm194, %v170, 0
        %vm196 = vcmp.gt.s32.totalorder %v171, 0
        %v197 = vsel %vm196, %v171, 0
        %vm198 = vcmp.gt.s32.totalorder %v172, 0
        %v199 = vsel %vm198, %v172, 0
        %vm200 = vcmp.gt.s32.totalorder %v173, 0
        %v201 = vsel %vm200, %v173, 0
        %vm202 = vcmp.gt.s32.totalorder %v174, 0
        %v203 = vsel %vm202, %v174, 0
        %vm204 = vcmp.gt.s32.totalorder %v175, 0
        %v205 = vsel %vm204, %v175, 0
        %vm206 = vcmp.gt.s32.totalorder %v176, 0
        %v207 = vsel %vm206, %v176, 0
        %vm208 = vcmp.gt.s32.totalorder %v177, 0
        %v209 = vsel %vm208, %v177, 0
        %vm210 = vcmp.lt.s32.totalorder %v179, 9
        %v211 = vsel %vm210, %v179, 9
        %vm212 = vcmp.lt.s32.totalorder %v181, 9
        %v213 = vsel %vm212, %v181, 9
        %vm214 = vcmp.lt.s32.totalorder %v183, 9
        %v215 = vsel %vm214, %v183, 9
        %vm216 = vcmp.lt.s32.totalorder %v185, 9
        %v217 = vsel %vm216, %v185, 9
        %vm218 = vcmp.lt.s32.totalorder %v187, 9
        %v219 = vsel %vm218, %v187, 9
        %vm220 = vcmp.lt.s32.totalorder %v189, 9
        %v221 = vsel %vm220, %v189, 9
        %vm222 = vcmp.lt.s32.totalorder %v191, 9
        %v223 = vsel %vm222, %v191, 9
        %vm224 = vcmp.lt.s32.totalorder %v193, 9
        %v225 = vsel %vm224, %v193, 9
        %vm226 = vcmp.lt.s32.totalorder %v195, 9
        %v227 = vsel %vm226, %v195, 9
        %vm228 = vcmp.lt.s32.totalorder %v197, 9
        %v229 = vsel %vm228, %v197, 9
        %vm230 = vcmp.lt.s32.totalorder %v199, 9
        %v231 = vsel %vm230, %v199, 9
        %vm232 = vcmp.lt.s32.totalorder %v201, 9
        %v233 = vsel %vm232, %v201, 9
        %vm234 = vcmp.lt.s32.totalorder %v203, 9
        %v235 = vsel %vm234, %v203, 9
        %vm236 = vcmp.lt.s32.totalorder %v205, 9
        %v237 = vsel %vm236, %v205, 9
        %vm238 = vcmp.lt.s32.totalorder %v207, 9
        %v239 = vsel %vm238, %v207, 9
        %vm240 = vcmp.lt.s32.totalorder %v209, 9
        %v241 = vsel %vm240, %v209, 9
        %vm242 = vcmp.lt.s32.totalorder %v179, 63
        %v243 = vsel %vm242, %v179, 63
        %vm244 = vcmp.lt.s32.totalorder %v181, 63
        %v245 = vsel %vm244, %v181, 63
        %vm246 = vcmp.lt.s32.totalorder %v183, 63
        %v247 = vsel %vm246, %v183, 63
        %vm248 = vcmp.lt.s32.totalorder %v185, 63
        %v249 = vsel %vm248, %v185, 63
        %vm250 = vcmp.lt.s32.totalorder %v187, 63
        %v251 = vsel %vm250, %v187, 63
        %vm252 = vcmp.lt.s32.totalorder %v189, 63
        %v253 = vsel %vm252, %v189, 63
        %vm254 = vcmp.lt.s32.totalorder %v191, 63
        %v255 = vsel %vm254, %v191, 63
        %vm256 = vcmp.lt.s32.totalorder %v193, 63
        %v257 = vsel %vm256, %v193, 63
        %vm258 = vcmp.lt.s32.totalorder %v195, 63
        %v259 = vsel %vm258, %v195, 63
        %vm260 = vcmp.lt.s32.totalorder %v197, 63
        %v261 = vsel %vm260, %v197, 63
        %vm262 = vcmp.lt.s32.totalorder %v199, 63
        %v263 = vsel %vm262, %v199, 63
        %vm264 = vcmp.lt.s32.totalorder %v201, 63
        %v265 = vsel %vm264, %v201, 63
        %vm266 = vcmp.lt.s32.totalorder %v203, 63
        %v267 = vsel %vm266, %v203, 63
        %vm268 = vcmp.lt.s32.totalorder %v205, 63
        %v269 = vsel %vm268, %v205, 63
        %vm270 = vcmp.lt.s32.totalorder %v207, 63
        %v271 = vsel %vm270, %v207, 63
        %vm272 = vcmp.lt.s32.totalorder %v209, 63
        %v273 = vsel %vm272, %v209, 63
        %vm274 = vcmp.lt.s32.totalorder %v179, 31
        %v275 = vsel %vm274, %v179, 31
        %vm276 = vcmp.lt.s32.totalorder %v181, 31
        %v277 = vsel %vm276, %v181, 31
        %vm278 = vcmp.lt.s32.totalorder %v183, 31
        %v279 = vsel %vm278, %v183, 31
        %vm280 = vcmp.lt.s32.totalorder %v185, 31
        %v281 = vsel %vm280, %v185, 31
        %vm282 = vcmp.lt.s32.totalorder %v187, 31
        %v283 = vsel %vm282, %v187, 31
        %vm284 = vcmp.lt.s32.totalorder %v189, 31
        %v285 = vsel %vm284, %v189, 31
        %vm286 = vcmp.lt.s32.totalorder %v191, 31
        %v287 = vsel %vm286, %v191, 31
        %vm288 = vcmp.lt.s32.totalorder %v193, 31
        %v289 = vsel %vm288, %v193, 31
        %vm290 = vcmp.lt.s32.totalorder %v195, 31
        %v291 = vsel %vm290, %v195, 31
        %vm292 = vcmp.lt.s32.totalorder %v197, 31
        %v293 = vsel %vm292, %v197, 31
        %vm294 = vcmp.lt.s32.totalorder %v199, 31
        %v295 = vsel %vm294, %v199, 31
        %vm296 = vcmp.lt.s32.totalorder %v201, 31
        %v297 = vsel %vm296, %v201, 31
        %vm298 = vcmp.lt.s32.totalorder %v203, 31
        %v299 = vsel %vm298, %v203, 31
        %vm300 = vcmp.lt.s32.totalorder %v205, 31
        %v301 = vsel %vm300, %v205, 31
        %vm302 = vcmp.lt.s32.totalorder %v207, 31
        %v303 = vsel %vm302, %v207, 31
        %vm304 = vcmp.lt.s32.totalorder %v209, 31
        %v305 = vsel %vm304, %v209, 31
        %v306 = vlaneseq
        %v307 = vand.u32 %v306, 127
        %308 = vset.pattern.permute.xlu0 0
        %309 = vperm.xlu0 %308, %v211
        %v310 = vpop.permute.xlu0 %309
        %311 = vset.pattern.permute.xlu0 0
        %312 = vperm.xlu0 %311, %v213
        %v313 = vpop.permute.xlu0 %312
        %314 = vset.pattern.permute.xlu0 0
        %315 = vperm.xlu0 %314, %v215
        %v316 = vpop.permute.xlu0 %315
        %317 = vset.pattern.permute.xlu0 0
        %318 = vperm.xlu0 %317, %v217
        %v319 = vpop.permute.xlu0 %318
        %320 = vset.pattern.permute.xlu0 0
        %321 = vperm.xlu0 %320, %v219
        %v322 = vpop.permute.xlu0 %321
        %323 = vset.pattern.permute.xlu0 0
        %324 = vperm.xlu0 %323, %v221
        %v325 = vpop.permute.xlu0 %324
        %326 = vset.pattern.permute.xlu0 0
        %327 = vperm.xlu0 %326, %v223
        %v328 = vpop.permute.xlu0 %327
        %329 = vset.pattern.permute.xlu0 0
        %330 = vperm.xlu0 %329, %v225
        %v331 = vpop.permute.xlu0 %330
        %332 = vset.pattern.permute.xlu0 0
        %333 = vperm.xlu0 %332, %v227
        %v334 = vpop.permute.xlu0 %333
        %335 = vset.pattern.permute.xlu0 0
        %336 = vperm.xlu0 %335, %v229
        %v337 = vpop.permute.xlu0 %336
        %338 = vset.pattern.permute.xlu0 0
        %339 = vperm.xlu0 %338, %v231
        %v340 = vpop.permute.xlu0 %339
        %341 = vset.pattern.permute.xlu0 0
        %342 = vperm.xlu0 %341, %v233
        %v343 = vpop.permute.xlu0 %342
        %344 = vset.pattern.permute.xlu0 0
        %345 = vperm.xlu0 %344, %v235
        %v346 = vpop.permute.xlu0 %345
        %347 = vset.pattern.permute.xlu0 0
        %348 = vperm.xlu0 %347, %v237
        %v349 = vpop.permute.xlu0 %348
        %350 = vset.pattern.permute.xlu0 0
        %351 = vperm.xlu0 %350, %v239
        %v352 = vpop.permute.xlu0 %351
        %353 = vset.pattern.permute.xlu0 0
        %354 = vperm.xlu0 %353, %v241
        %v355 = vpop.permute.xlu0 %354
        %vm356 = vcmp.eq.s32.totalorder %v307, %v310
        %vm357 = vcmp.eq.s32.totalorder %v307, %v313
        %vm358 = vcmp.eq.s32.totalorder %v307, %v316
        %vm359 = vcmp.eq.s32.totalorder %v307, %v319
        %vm360 = vcmp.eq.s32.totalorder %v307, %v322
        %vm361 = vcmp.eq.s32.totalorder %v307, %v325
        %vm362 = vcmp.eq.s32.totalorder %v307, %v328
        %vm363 = vcmp.eq.s32.totalorder %v307, %v331
        %vm364 = vcmp.eq.s32.totalorder %v307, %v334
        %vm365 = vcmp.eq.s32.totalorder %v307, %v337
        %vm366 = vcmp.eq.s32.totalorder %v307, %v340
        %vm367 = vcmp.eq.s32.totalorder %v307, %v343
        %vm368 = vcmp.eq.s32.totalorder %v307, %v346
        %vm369 = vcmp.eq.s32.totalorder %v307, %v349
        %vm370 = vcmp.eq.s32.totalorder %v307, %v352
        %vm371 = vcmp.eq.s32.totalorder %v307, %v355
        %v372 = vadd.s32 %v243, 10
        %v373 = vadd.s32 %v245, 10
        %v374 = vadd.s32 %v247, 10
        %v375 = vadd.s32 %v249, 10
        %v376 = vadd.s32 %v251, 10
        %v377 = vadd.s32 %v253, 10
        %v378 = vadd.s32 %v255, 10
        %v379 = vadd.s32 %v257, 10
        %v380 = vadd.s32 %v259, 10
        %v381 = vadd.s32 %v261, 10
        %v382 = vadd.s32 %v263, 10
        %v383 = vadd.s32 %v265, 10
        %v384 = vadd.s32 %v267, 10
        %v385 = vadd.s32 %v269, 10
        %v386 = vadd.s32 %v271, 10
        %v387 = vadd.s32 %v273, 10
        %388 = vset.pattern.permute.xlu0 1
        %389 = vperm.xlu0 %388, %v372
        %v390 = vpop.permute.xlu0 %389
        %391 = vset.pattern.permute.xlu0 1
        %392 = vperm.xlu0 %391, %v373
        %v393 = vpop.permute.xlu0 %392
        %394 = vset.pattern.permute.xlu0 1
        %395 = vperm.xlu0 %394, %v374
        %v396 = vpop.permute.xlu0 %395
        %397 = vset.pattern.permute.xlu0 1
        %398 = vperm.xlu0 %397, %v375
        %v399 = vpop.permute.xlu0 %398
        %400 = vset.pattern.permute.xlu0 1
        %401 = vperm.xlu0 %400, %v376
        %v402 = vpop.permute.xlu0 %401
        %403 = vset.pattern.permute.xlu0 1
        %404 = vperm.xlu0 %403, %v377
        %v405 = vpop.permute.xlu0 %404
        %406 = vset.pattern.permute.xlu0 1
        %407 = vperm.xlu0 %406, %v378
        %v408 = vpop.permute.xlu0 %407
        %409 = vset.pattern.permute.xlu0 1
        %410 = vperm.xlu0 %409, %v379
        %v411 = vpop.permute.xlu0 %410
        %412 = vset.pattern.permute.xlu0 1
        %413 = vperm.xlu0 %412, %v380
        %v414 = vpop.permute.xlu0 %413
        %415 = vset.pattern.permute.xlu0 1
        %416 = vperm.xlu0 %415, %v381
        %v417 = vpop.permute.xlu0 %416
        %418 = vset.pattern.permute.xlu0 1
        %419 = vperm.xlu0 %418, %v382
        %v420 = vpop.permute.xlu0 %419
        %421 = vset.pattern.permute.xlu0 1
        %422 = vperm.xlu0 %421, %v383
        %v423 = vpop.permute.xlu0 %422
        %424 = vset.pattern.permute.xlu0 1
        %425 = vperm.xlu0 %424, %v384
        %v426 = vpop.permute.xlu0 %425
        %427 = vset.pattern.permute.xlu0 1
        %428 = vperm.xlu0 %427, %v385
        %v429 = vpop.permute.xlu0 %428
        %430 = vset.pattern.permute.xlu0 1
        %431 = vperm.xlu0 %430, %v386
        %v432 = vpop.permute.xlu0 %431
        %433 = vset.pattern.permute.xlu0 1
        %434 = vperm.xlu0 %433, %v387
        %v435 = vpop.permute.xlu0 %434
        %vm436 = vcmp.eq.s32.totalorder %v307, %v390
        %vm437 = vcmp.eq.s32.totalorder %v307, %v393
        %vm438 = vcmp.eq.s32.totalorder %v307, %v396
        %vm439 = vcmp.eq.s32.totalorder %v307, %v399
        %vm440 = vcmp.eq.s32.totalorder %v307, %v402
        %vm441 = vcmp.eq.s32.totalorder %v307, %v405
        %vm442 = vcmp.eq.s32.totalorder %v307, %v408
        %vm443 = vcmp.eq.s32.totalorder %v307, %v411
        %vm444 = vcmp.eq.s32.totalorder %v307, %v414
        %vm445 = vcmp.eq.s32.totalorder %v307, %v417
        %vm446 = vcmp.eq.s32.totalorder %v307, %v420
        %vm447 = vcmp.eq.s32.totalorder %v307, %v423
        %vm448 = vcmp.eq.s32.totalorder %v307, %v426
        %vm449 = vcmp.eq.s32.totalorder %v307, %v429
        %vm450 = vcmp.eq.s32.totalorder %v307, %v432
        %vm451 = vcmp.eq.s32.totalorder %v307, %v435
        %vm452 = vmor %vm356, %vm436
        %vm453 = vmor %vm357, %vm437
        %vm454 = vmor %vm358, %vm438
        %vm455 = vmor %vm359, %vm439
        %vm456 = vmor %vm360, %vm440
        %vm457 = vmor %vm361, %vm441
        %vm458 = vmor %vm362, %vm442
        %vm459 = vmor %vm363, %vm443
        %vm460 = vmor %vm364, %vm444
        %vm461 = vmor %vm365, %vm445
        %vm462 = vmor %vm366, %vm446
        %vm463 = vmor %vm367, %vm447
        %vm464 = vmor %vm368, %vm448
        %vm465 = vmor %vm369, %vm449
        %vm466 = vmor %vm370, %vm450
        %vm467 = vmor %vm371, %vm451
        %v468 = vadd.s32 %v275, 74
        %v469 = vadd.s32 %v277, 74
        %v470 = vadd.s32 %v279, 74
        %v471 = vadd.s32 %v281, 74
        %v472 = vadd.s32 %v283, 74
        %v473 = vadd.s32 %v285, 74
        %v474 = vadd.s32 %v287, 74
        %v475 = vadd.s32 %v289, 74
        %v476 = vadd.s32 %v291, 74
        %v477 = vadd.s32 %v293, 74
        %v478 = vadd.s32 %v295, 74
        %v479 = vadd.s32 %v297, 74
        %v480 = vadd.s32 %v299, 74
        %v481 = vadd.s32 %v301, 74
        %v482 = vadd.s32 %v303, 74
        %v483 = vadd.s32 %v305, 74
        %484 = vset.pattern.permute.xlu0 15
        %485 = vperm.xlu0 %484, %v468
        %v486 = vpop.permute.xlu0 %485
        %487 = vset.pattern.permute.xlu0 15
        %488 = vperm.xlu0 %487, %v469
        %v489 = vpop.permute.xlu0 %488
        %490 = vset.pattern.permute.xlu0 15
        %491 = vperm.xlu0 %490, %v470
        %v492 = vpop.permute.xlu0 %491
        %493 = vset.pattern.permute.xlu0 15
        %494 = vperm.xlu0 %493, %v471
        %v495 = vpop.permute.xlu0 %494
        %496 = vset.pattern.permute.xlu0 15
        %497 = vperm.xlu0 %496, %v472
        %v498 = vpop.permute.xlu0 %497
        %499 = vset.pattern.permute.xlu0 15
        %500 = vperm.xlu0 %499, %v473
        %v501 = vpop.permute.xlu0 %500
        %502 = vset.pattern.permute.xlu0 15
        %503 = vperm.xlu0 %502, %v474
        %v504 = vpop.permute.xlu0 %503
        %505 = vset.pattern.permute.xlu0 15
        %506 = vperm.xlu0 %505, %v475
        %v507 = vpop.permute.xlu0 %506
        %508 = vset.pattern.permute.xlu0 15
        %509 = vperm.xlu0 %508, %v476
        %v510 = vpop.permute.xlu0 %509
        %511 = vset.pattern.permute.xlu0 15
        %512 = vperm.xlu0 %511, %v477
        %v513 = vpop.permute.xlu0 %512
        %514 = vset.pattern.permute.xlu0 15
        %515 = vperm.xlu0 %514, %v478
        %v516 = vpop.permute.xlu0 %515
        %517 = vset.pattern.permute.xlu0 15
        %518 = vperm.xlu0 %517, %v479
        %v519 = vpop.permute.xlu0 %518
        %520 = vset.pattern.permute.xlu0 15
        %521 = vperm.xlu0 %520, %v480
        %v522 = vpop.permute.xlu0 %521
        %523 = vset.pattern.permute.xlu0 15
        %524 = vperm.xlu0 %523, %v481
        %v525 = vpop.permute.xlu0 %524
        %526 = vset.pattern.permute.xlu0 15
        %527 = vperm.xlu0 %526, %v482
        %v528 = vpop.permute.xlu0 %527
        %529 = vset.pattern.permute.xlu0 15
        %530 = vperm.xlu0 %529, %v483
        %v531 = vpop.permute.xlu0 %530
        %vm532 = vcmp.eq.s32.totalorder %v307, %v486
        %vm533 = vcmp.eq.s32.totalorder %v307, %v489
        %vm534 = vcmp.eq.s32.totalorder %v307, %v492
        %vm535 = vcmp.eq.s32.totalorder %v307, %v495
        %vm536 = vcmp.eq.s32.totalorder %v307, %v498
        %vm537 = vcmp.eq.s32.totalorder %v307, %v501
        %vm538 = vcmp.eq.s32.totalorder %v307, %v504
        %vm539 = vcmp.eq.s32.totalorder %v307, %v507
        %vm540 = vcmp.eq.s32.totalorder %v307, %v510
        %vm541 = vcmp.eq.s32.totalorder %v307, %v513
        %vm542 = vcmp.eq.s32.totalorder %v307, %v516
        %vm543 = vcmp.eq.s32.totalorder %v307, %v519
        %vm544 = vcmp.eq.s32.totalorder %v307, %v522
        %vm545 = vcmp.eq.s32.totalorder %v307, %v525
        %vm546 = vcmp.eq.s32.totalorder %v307, %v528
        %vm547 = vcmp.eq.s32.totalorder %v307, %v531
        %vm548 = vmor %vm452, %vm532
        %vm549 = vmor %vm453, %vm533
        %vm550 = vmor %vm454, %vm534
        %vm551 = vmor %vm455, %vm535
        %vm552 = vmor %vm456, %vm536
        %vm553 = vmor %vm457, %vm537
        %vm554 = vmor %vm458, %vm538
        %vm555 = vmor %vm459, %vm539
        %vm556 = vmor %vm460, %vm540
        %vm557 = vmor %vm461, %vm541
        %vm558 = vmor %vm462, %vm542
        %vm559 = vmor %vm463, %vm543
        %vm560 = vmor %vm464, %vm544
        %vm561 = vmor %vm465, %vm545
        %vm562 = vmor %vm466, %vm546
        %vm563 = vmor %vm467, %vm547
        %vm564 = vcmp.eq.s32.totalorder %v307, 106
        %vm565 = vmor %vm548, %vm564
        %vm566 = vmor %vm549, %vm564
        %vm567 = vmor %vm550, %vm564
        %vm568 = vmor %vm551, %vm564
        %vm569 = vmor %vm552, %vm564
        %vm570 = vmor %vm553, %vm564
        %vm571 = vmor %vm554, %vm564
        %vm572 = vmor %vm555, %vm564
        %vm573 = vmor %vm556, %vm564
        %vm574 = vmor %vm557, %vm564
        %vm575 = vmor %vm558, %vm564
        %vm576 = vmor %vm559, %vm564
        %vm577 = vmor %vm560, %vm564
        %vm578 = vmor %vm561, %vm564
        %vm579 = vmor %vm562, %vm564
        %vm580 = vmor %vm563, %vm564
        %v581 = vsel %vm565, 1, 0
        %v582 = vsel %vm566, 1, 0
        %v583 = vsel %vm567, 1, 0
        %v584 = vsel %vm568, 1, 0
        %v585 = vsel %vm569, 1, 0
        %v586 = vsel %vm570, 1, 0
        %v587 = vsel %vm571, 1, 0
        %v588 = vsel %vm572, 1, 0
        %v589 = vsel %vm573, 1, 0
        %v590 = vsel %vm574, 1, 0
        %v591 = vsel %vm575, 1, 0
        %v592 = vsel %vm576, 1, 0
        %v593 = vsel %vm577, 1, 0
        %v594 = vsel %vm578, 1, 0
        %v595 = vsel %vm579, 1, 0
        %v596 = vsel %vm580, 1, 0
        %v597 = vcvt.s32.f32 %v581
        %v598 = vcvt.s32.f32 %v582
        %v599 = vcvt.s32.f32 %v583
        %v600 = vcvt.s32.f32 %v584
        %v601 = vcvt.s32.f32 %v585
        %v602 = vcvt.s32.f32 %v586
        %v603 = vcvt.s32.f32 %v587
        %v604 = vcvt.s32.f32 %v588
        %v605 = vcvt.s32.f32 %v589
        %v606 = vcvt.s32.f32 %v590
        %v607 = vcvt.s32.f32 %v591
        %v608 = vcvt.s32.f32 %v592
        %v609 = vcvt.s32.f32 %v593
        %v610 = vcvt.s32.f32 %v594
        %v611 = vcvt.s32.f32 %v595
        %v612 = vcvt.s32.f32 %v596
        %629 = vrot.lane.b32.xlu0 %v597, 16
        %v630 = vpop.permute.xlu0 %629
        %631 = vrot.lane.b32.xlu0 %v598, 16
        %v632 = vpop.permute.xlu0 %631
        %633 = vrot.lane.b32.xlu0 %v599, 16
        %v634 = vpop.permute.xlu0 %633
        %635 = vrot.lane.b32.xlu0 %v600, 16
        %v636 = vpop.permute.xlu0 %635
        %637 = vrot.lane.b32.xlu0 %v601, 16
        %v638 = vpop.permute.xlu0 %637
        %639 = vrot.lane.b32.xlu0 %v602, 16
        %v640 = vpop.permute.xlu0 %639
        %641 = vrot.lane.b32.xlu0 %v603, 16
        %v642 = vpop.permute.xlu0 %641
        %643 = vrot.lane.b32.xlu0 %v604, 16
        %v644 = vpop.permute.xlu0 %643
        %645 = vrot.lane.b32.xlu0 %v605, 16
        %v646 = vpop.permute.xlu0 %645
        %647 = vrot.lane.b32.xlu0 %v606, 16
        %v648 = vpop.permute.xlu0 %647
        %649 = vrot.lane.b32.xlu0 %v607, 16
        %v650 = vpop.permute.xlu0 %649
        %651 = vrot.lane.b32.xlu0 %v608, 16
        %v652 = vpop.permute.xlu0 %651
        %653 = vrot.lane.b32.xlu0 %v609, 16
        %v654 = vpop.permute.xlu0 %653
        %655 = vrot.lane.b32.xlu0 %v610, 16
        %v656 = vpop.permute.xlu0 %655
        %657 = vrot.lane.b32.xlu0 %v611, 16
        %v658 = vpop.permute.xlu0 %657
        %659 = vrot.lane.b32.xlu0 %v612, 16
        %v660 = vpop.permute.xlu0 %659
        %vm677 = vcmask 130048
        %v678 = vsel %vm677, %v146, %v630
        %v679 = vsel %vm677, %v147, %v632
        %v680 = vsel %vm677, %v148, %v634
        %v681 = vsel %vm677, %v149, %v636
        %v682 = vsel %vm677, %v150, %v638
        %v683 = vsel %vm677, %v151, %v640
        %v684 = vsel %vm677, %v152, %v642
        %v685 = vsel %vm677, %v153, %v644
        %v686 = vsel %vm677, %v154, %v646
        %v687 = vsel %vm677, %v155, %v648
        %v688 = vsel %vm677, %v156, %v650
        %v689 = vsel %vm677, %v157, %v652
        %v690 = vsel %vm677, %v158, %v654
        %v691 = vsel %vm677, %v159, %v656
        %v692 = vsel %vm677, %v160, %v658
        %v693 = vsel %vm677, %v161, %v660
        %v694 = vpack.c.bf16 %v679, %v678
        %v695 = vpack.c.bf16 %v681, %v680
        %v696 = vpack.c.bf16 %v683, %v682
        %v697 = vpack.c.bf16 %v685, %v684
        %v698 = vpack.c.bf16 %v687, %v686
        %v699 = vpack.c.bf16 %v689, %v688
        %v700 = vpack.c.bf16 %v691, %v690
        %v701 = vpack.c.bf16 %v693, %v692
        %v702 = vld [vmem:[%s1] sm:$0xff]
        %v703 = vld [vmem:[%s1 + $0x8] sm:$0xf]
        %v704 = vld [vmem:[%s1 + $0xc] sm:$0xff]
        %v705 = vld [vmem:[%s1 + $0x14] sm:$0xf]
        %v706 = vld [vmem:[%s1 + $0x18] sm:$0xff]
        %v707 = vld [vmem:[%s1 + $0x20] sm:$0xf]
        %v708 = vld [vmem:[%s1 + $0x24] sm:$0xff]
        %v709 = vld [vmem:[%s1 + $0x2c] sm:$0xf]
        %v710 = vld [vmem:[%s1 + $0x30] sm:$0xff]
        %v711 = vld [vmem:[%s1 + $0x38] sm:$0xf]
        %v712 = vld [vmem:[%s1 + $0x3c] sm:$0xff]
        %v713 = vld [vmem:[%s1 + $0x44] sm:$0xf]
        %v714 = vld [vmem:[%s1 + $0x48] sm:$0xff]
        %v715 = vld [vmem:[%s1 + $0x50] sm:$0xf]
        %v716 = vld [vmem:[%s1 + $0x54] sm:$0xff]
        %v717 = vld [vmem:[%s1 + $0x5c] sm:$0xf]
        %v718 = vld [vmem:[%s1 + $0x60] sm:$0xff]
        %v719 = vld [vmem:[%s1 + $0x68] sm:$0xf]
        %v720 = vld [vmem:[%s1 + $0x6c] sm:$0xff]
        %v721 = vld [vmem:[%s1 + $0x74] sm:$0xf]
        %v722 = vld [vmem:[%s1 + $0x78] sm:$0xff]
        %v723 = vld [vmem:[%s1 + $0x80] sm:$0xf]
        %v724 = vld [vmem:[%s1 + $0x84] sm:$0xff]
        %v725 = vld [vmem:[%s1 + $0x8c] sm:$0xf]
        %v726 = vld [vmem:[%s1 + $0x90] sm:$0xff]
        %v727 = vld [vmem:[%s1 + $0x98] sm:$0xf]
        %v728 = vld [vmem:[%s1 + $0x9c] sm:$0xff]
        %v729 = vld [vmem:[%s1 + $0xa4] sm:$0xf]
        %v730 = vld [vmem:[%s1 + $0xa8] sm:$0xff]
        %v731 = vld [vmem:[%s1 + $0xb0] sm:$0xf]
        %v732 = vld [vmem:[%s1 + $0xb4] sm:$0xff]
        %v733 = vld [vmem:[%s1 + $0xbc] sm:$0xf]
        %v766 = vunpack.c.l.b16 %v702
        %v767 = vunpack.c.h.b16 %v702
        %v768 = vunpack.c.l.b16 %v703
        %v769 = vunpack.c.l.b16 %v704
        %v770 = vunpack.c.h.b16 %v704
        %v771 = vunpack.c.l.b16 %v705
        %v772 = vunpack.c.l.b16 %v706
        %v773 = vunpack.c.h.b16 %v706
        %v774 = vunpack.c.l.b16 %v707
        %v775 = vunpack.c.l.b16 %v708
        %v776 = vunpack.c.h.b16 %v708
        %v777 = vunpack.c.l.b16 %v709
        %v778 = vunpack.c.l.b16 %v710
        %v779 = vunpack.c.h.b16 %v710
        %v780 = vunpack.c.l.b16 %v711
        %v781 = vunpack.c.l.b16 %v712
        %v782 = vunpack.c.h.b16 %v712
        %v783 = vunpack.c.l.b16 %v713
        %v784 = vunpack.c.l.b16 %v714
        %v785 = vunpack.c.h.b16 %v714
        %v786 = vunpack.c.l.b16 %v715
        %v787 = vunpack.c.l.b16 %v716
        %v788 = vunpack.c.h.b16 %v716
        %v789 = vunpack.c.l.b16 %v717
        %v790 = vunpack.c.l.b16 %v718
        %v791 = vunpack.c.h.b16 %v718
        %v792 = vunpack.c.l.b16 %v719
        %v793 = vunpack.c.l.b16 %v720
        %v794 = vunpack.c.h.b16 %v720
        %v795 = vunpack.c.l.b16 %v721
        %v796 = vunpack.c.l.b16 %v722
        %v797 = vunpack.c.h.b16 %v722
        %v798 = vunpack.c.l.b16 %v723
        %v799 = vunpack.c.l.b16 %v724
        %v800 = vunpack.c.h.b16 %v724
        %v801 = vunpack.c.l.b16 %v725
        %v802 = vunpack.c.l.b16 %v726
        %v803 = vunpack.c.h.b16 %v726
        %v804 = vunpack.c.l.b16 %v727
        %v805 = vunpack.c.l.b16 %v728
        %v806 = vunpack.c.h.b16 %v728
        %v807 = vunpack.c.l.b16 %v729
        %v808 = vunpack.c.l.b16 %v730
        %v809 = vunpack.c.h.b16 %v730
        %v810 = vunpack.c.l.b16 %v731
        %v811 = vunpack.c.l.b16 %v732
        %v812 = vunpack.c.h.b16 %v732
        %v813 = vunpack.c.l.b16 %v733
        %v814 = vpack.c.b16 %v769, %v766
        %v815 = vpack.c.b16 %v770, %v767
        %v816 = vpack.c.b16 %v771, %v768
        %v817 = vpack.c.b16 %v775, %v772
        %v818 = vpack.c.b16 %v776, %v773
        %v819 = vpack.c.b16 %v777, %v774
        %v820 = vpack.c.b16 %v781, %v778
        %v821 = vpack.c.b16 %v782, %v779
        %v822 = vpack.c.b16 %v783, %v780
        %v823 = vpack.c.b16 %v787, %v784
        %v824 = vpack.c.b16 %v788, %v785
        %v825 = vpack.c.b16 %v789, %v786
        %v826 = vpack.c.b16 %v793, %v790
        %v827 = vpack.c.b16 %v794, %v791
        %v828 = vpack.c.b16 %v795, %v792
        %v829 = vpack.c.b16 %v799, %v796
        %v830 = vpack.c.b16 %v800, %v797
        %v831 = vpack.c.b16 %v801, %v798
        %v832 = vpack.c.b16 %v805, %v802
        %v833 = vpack.c.b16 %v806, %v803
        %v834 = vpack.c.b16 %v807, %v804
        %v835 = vpack.c.b16 %v811, %v808
        %v836 = vpack.c.b16 %v812, %v809
        %v837 = vpack.c.b16 %v813, %v810
        %862 = vmatprep.subr.bf16.mxu0 %v836
        %863 = vmatpush1.bf16.msra.mxu0 %v835
        %864 = vmatprep.subr.bf16.mxu0 %v833
        %865 = vmatpush1.bf16.msra.mxu0 %v832
        %866 = vmatprep.subr.bf16.mxu0 %v830
        %867 = vmatpush1.bf16.msra.mxu0 %v829
        %868 = vmatprep.subr.bf16.mxu0 %v827
        %869 = vmatpush1.bf16.msra.mxu0 %v826
        %870 = vmatprep.subr.bf16.mxu0 %v824
        %871 = vmatpush1.bf16.msra.mxu0 %v823
        %872 = vmatprep.subr.bf16.mxu0 %v821
        %873 = vmatpush1.bf16.msra.mxu0 %v820
        %874 = vmatprep.subr.bf16.mxu0 %v818
        %875 = vmatpush1.bf16.msra.mxu0 %v817
        %876 = vmatprep.subr.bf16.mxu0 %v815
        %877 = vmatpush1.bf16.msra.mxu0 %v814
        %878 = vmatprep.subr.bf16.mxu0 0
        %879 = vmatpush2.bf16.msra.mxu0 0
        %880 = vmatprep.subr.bf16.mxu0 0
        %881 = vmatpush2.bf16.msra.mxu0 0
        %882 = vmatprep.subr.bf16.mxu0 0
        %883 = vmatpush2.bf16.msra.mxu0 0
        %884 = vmatprep.subr.bf16.mxu0 0
        %885 = vmatpush2.bf16.msra.mxu0 0
        %886 = vmatprep.subr.bf16.mxu0 0
        %887 = vmatpush2.bf16.msra.mxu0 0
        %888 = vmatprep.subr.bf16.mxu0 0
        %889 = vmatpush2.bf16.msra.mxu0 0
        %890 = vmatprep.subr.bf16.mxu0 0
        %891 = vmatpush2.bf16.msra.mxu0 0
        %892 = vmatprep.subr.bf16.mxu0 0
        %893 = vmatpush2.bf16.msra.mxu0 0
        %894 = vmatprep.mubr.bf16.mxu0 0
        %895 = vmatmul.mubr.bf16.gmra.mxu0 %v694
        %v896 = vpop.f32.mrf.mxu0
        %v897 = vadd.f32 0.0, %v896
        %v898 = vpop.f32.mrf.mxu0
        %v899 = vadd.f32 0.0, %v898
        %v900 = vpop.f32.mrf.mxu0
        %v901 = vadd.f32 0.0, %v900
        %v902 = vpop.f32.mrf.mxu0
        %v903 = vadd.f32 0.0, %v902
        %904 = vmatprep.mubr.bf16.mxu0 0
        %905 = vmatmul.mubr.bf16.gmra.mxu0 %v695
        %v906 = vpop.f32.mrf.mxu0
        %v907 = vadd.f32 0.0, %v906
        %v908 = vpop.f32.mrf.mxu0
        %v909 = vadd.f32 0.0, %v908
        %v910 = vpop.f32.mrf.mxu0
        %v911 = vadd.f32 0.0, %v910
        %v912 = vpop.f32.mrf.mxu0
        %v913 = vadd.f32 0.0, %v912
        %914 = vmatprep.mubr.bf16.mxu0 0
        %915 = vmatmul.mubr.bf16.gmra.mxu0 %v696
        %v916 = vpop.f32.mrf.mxu0
        %v917 = vadd.f32 0.0, %v916
        %v918 = vpop.f32.mrf.mxu0
        %v919 = vadd.f32 0.0, %v918
        %v920 = vpop.f32.mrf.mxu0
        %v921 = vadd.f32 0.0, %v920
        %v922 = vpop.f32.mrf.mxu0
        %v923 = vadd.f32 0.0, %v922
        %924 = vmatprep.mubr.bf16.mxu0 0
        %925 = vmatmul.mubr.bf16.gmra.mxu0 %v697
        %v926 = vpop.f32.mrf.mxu0
        %v927 = vadd.f32 0.0, %v926
        %v928 = vpop.f32.mrf.mxu0
        %v929 = vadd.f32 0.0, %v928
        %v930 = vpop.f32.mrf.mxu0
        %v931 = vadd.f32 0.0, %v930
        %v932 = vpop.f32.mrf.mxu0
        %v933 = vadd.f32 0.0, %v932
        %934 = vmatprep.mubr.bf16.mxu0 0
        %935 = vmatmul.mubr.bf16.gmra.mxu0 %v698
        %v936 = vpop.f32.mrf.mxu0
        %v937 = vadd.f32 0.0, %v936
        %v938 = vpop.f32.mrf.mxu0
        %v939 = vadd.f32 0.0, %v938
        %v940 = vpop.f32.mrf.mxu0
        %v941 = vadd.f32 0.0, %v940
        %v942 = vpop.f32.mrf.mxu0
        %v943 = vadd.f32 0.0, %v942
        %944 = vmatprep.mubr.bf16.mxu0 0
        %945 = vmatmul.mubr.bf16.gmra.mxu0 %v699
        %v946 = vpop.f32.mrf.mxu0
        %v947 = vadd.f32 0.0, %v946
        %v948 = vpop.f32.mrf.mxu0
        %v949 = vadd.f32 0.0, %v948
        %v950 = vpop.f32.mrf.mxu0
        %v951 = vadd.f32 0.0, %v950
        %v952 = vpop.f32.mrf.mxu0
        %v953 = vadd.f32 0.0, %v952
        %954 = vmatprep.mubr.bf16.mxu0 0
        %955 = vmatmul.mubr.bf16.gmra.mxu0 %v700
        %v956 = vpop.f32.mrf.mxu0
        %v957 = vadd.f32 0.0, %v956
        %v958 = vpop.f32.mrf.mxu0
        %v959 = vadd.f32 0.0, %v958
        %v960 = vpop.f32.mrf.mxu0
        %v961 = vadd.f32 0.0, %v960
        %v962 = vpop.f32.mrf.mxu0
        %v963 = vadd.f32 0.0, %v962
        %964 = vmatprep.mubr.bf16.mxu0 0
        %965 = vmatmul.mubr.bf16.gmra.mxu0 %v701
        %v966 = vpop.f32.mrf.mxu0
        %v967 = vadd.f32 0.0, %v966
        %v968 = vpop.f32.mrf.mxu0
        %v969 = vadd.f32 0.0, %v968
        %v970 = vpop.f32.mrf.mxu0
        %v971 = vadd.f32 0.0, %v970
        %v972 = vpop.f32.mrf.mxu0
        %v973 = vadd.f32 0.0, %v972
        %974 = vdwg.mxu0
        %975 = vmatprep.subr.bf16.mxu0 0
        %976 = vmatpush1.bf16.msra.mxu0 %v837
        %977 = vmatprep.subr.bf16.mxu0 0
        %978 = vmatpush1.bf16.msra.mxu0 %v834
        %979 = vmatprep.subr.bf16.mxu0 0
        %980 = vmatpush1.bf16.msra.mxu0 %v831
        %981 = vmatprep.subr.bf16.mxu0 0
        %982 = vmatpush1.bf16.msra.mxu0 %v828
        %983 = vmatprep.subr.bf16.mxu0 0
        %984 = vmatpush1.bf16.msra.mxu0 %v825
        %985 = vmatprep.subr.bf16.mxu0 0
        %986 = vmatpush1.bf16.msra.mxu0 %v822
        %987 = vmatprep.subr.bf16.mxu0 0
        %988 = vmatpush1.bf16.msra.mxu0 %v819
        %989 = vmatprep.subr.bf16.mxu0 0
        %990 = vmatpush1.bf16.msra.mxu0 %v816
        %991 = vmatprep.subr.bf16.mxu0 0
        %992 = vmatpush2.bf16.msra.mxu0 0
        %993 = vmatprep.subr.bf16.mxu0 0
        %994 = vmatpush2.bf16.msra.mxu0 0
        %995 = vmatprep.subr.bf16.mxu0 0
        %996 = vmatpush2.bf16.msra.mxu0 0
        %997 = vmatprep.subr.bf16.mxu0 0
        %998 = vmatpush2.bf16.msra.mxu0 0
        %999 = vmatprep.subr.bf16.mxu0 0
        %1000 = vmatpush2.bf16.msra.mxu0 0
        %1001 = vmatprep.subr.bf16.mxu0 0
        %1002 = vmatpush2.bf16.msra.mxu0 0
        %1003 = vmatprep.subr.bf16.mxu0 0
        %1004 = vmatpush2.bf16.msra.mxu0 0
        %1005 = vmatprep.subr.bf16.mxu0 0
        %1006 = vmatpush2.bf16.msra.mxu0 0
        %1007 = vmatprep.mubr.bf16.mxu0 0
        %1008 = vmatmul.mubr.bf16.gmra.mxu0 %v694
        %v1009 = vpop.f32.mrf.mxu0
        %v1010 = vadd.f32 0.0, %v1009
        %v1011 = vpop.f32.mrf.mxu0
        %v1012 = vpop.f32.mrf.mxu0
        %v1013 = vadd.f32 0.0, %v1012
        %v1014 = vpop.f32.mrf.mxu0
        %1015 = vmatprep.mubr.bf16.mxu0 0
        %1016 = vmatmul.mubr.bf16.gmra.mxu0 %v695
        %v1017 = vpop.f32.mrf.mxu0
        %v1018 = vadd.f32 0.0, %v1017
        %v1019 = vpop.f32.mrf.mxu0
        %v1020 = vpop.f32.mrf.mxu0
        %v1021 = vadd.f32 0.0, %v1020
        %v1022 = vpop.f32.mrf.mxu0
        %1023 = vmatprep.mubr.bf16.mxu0 0
        %1024 = vmatmul.mubr.bf16.gmra.mxu0 %v696
        %v1025 = vpop.f32.mrf.mxu0
        %v1026 = vadd.f32 0.0, %v1025
        %v1027 = vpop.f32.mrf.mxu0
        %v1028 = vpop.f32.mrf.mxu0
        %v1029 = vadd.f32 0.0, %v1028
        %v1030 = vpop.f32.mrf.mxu0
        %1031 = vmatprep.mubr.bf16.mxu0 0
        %1032 = vmatmul.mubr.bf16.gmra.mxu0 %v697
        %v1033 = vpop.f32.mrf.mxu0
        %v1034 = vadd.f32 0.0, %v1033
        %v1035 = vpop.f32.mrf.mxu0
        %v1036 = vpop.f32.mrf.mxu0
        %v1037 = vadd.f32 0.0, %v1036
        %v1038 = vpop.f32.mrf.mxu0
        %1039 = vmatprep.mubr.bf16.mxu0 0
        %1040 = vmatmul.mubr.bf16.gmra.mxu0 %v698
        %v1041 = vpop.f32.mrf.mxu0
        %v1042 = vadd.f32 0.0, %v1041
        %v1043 = vpop.f32.mrf.mxu0
        %v1044 = vpop.f32.mrf.mxu0
        %v1045 = vadd.f32 0.0, %v1044
        %v1046 = vpop.f32.mrf.mxu0
        %1047 = vmatprep.mubr.bf16.mxu0 0
        %1048 = vmatmul.mubr.bf16.gmra.mxu0 %v699
        %v1049 = vpop.f32.mrf.mxu0
        %v1050 = vadd.f32 0.0, %v1049
        %v1051 = vpop.f32.mrf.mxu0
        %v1052 = vpop.f32.mrf.mxu0
        %v1053 = vadd.f32 0.0, %v1052
        %v1054 = vpop.f32.mrf.mxu0
        %1055 = vmatprep.mubr.bf16.mxu0 0
        %1056 = vmatmul.mubr.bf16.gmra.mxu0 %v700
        %v1057 = vpop.f32.mrf.mxu0
        %v1058 = vadd.f32 0.0, %v1057
        %v1059 = vpop.f32.mrf.mxu0
        %v1060 = vpop.f32.mrf.mxu0
        %v1061 = vadd.f32 0.0, %v1060
        %v1062 = vpop.f32.mrf.mxu0
        %1063 = vmatprep.mubr.bf16.mxu0 0
        %1064 = vmatmul.mubr.bf16.gmra.mxu0 %v701
        %v1065 = vpop.f32.mrf.mxu0
        %v1066 = vadd.f32 0.0, %v1065
        %v1067 = vpop.f32.mrf.mxu0
        %v1068 = vpop.f32.mrf.mxu0
        %v1069 = vadd.f32 0.0, %v1068
        %v1070 = vpop.f32.mrf.mxu0
        %1071 = vdwg.mxu0
        %v1072 = vadd.s32 %v307, 128
        %v1073 = vadd.s32 %v307, 256
        %vm1074 = vcmp.lt.s32.totalorder %v307, 16
        %vm1075 = vcmp.lt.s32.totalorder %v1072, 16
        %vm1076 = vcmp.lt.s32.totalorder %v1073, 16
        %vm1077 = vcmp.ge.s32.totalorder %v307, 32
        %vm1078 = vcmp.ge.s32.totalorder %v1072, 32
        %vm1079 = vcmp.ge.s32.totalorder %v1073, 32
        %vm1080 = vcmp.lt.s32.totalorder %v307, 64
        %vm1081 = vcmp.lt.s32.totalorder %v1072, 64
        %vm1082 = vcmp.lt.s32.totalorder %v1073, 64
        %vm1083 = vmand %vm1077, %vm1080
        %vm1084 = vmand %vm1078, %vm1081
        %vm1085 = vmand %vm1079, %vm1082
        %vm1086 = vmor %vm1074, %vm1083
        %vm1087 = vmor %vm1075, %vm1084
        %vm1088 = vmor %vm1076, %vm1085
        %v1089 = vmax.f32 %v897, 0.0
        %v1090 = vmax.f32 %v899, 0.0
        %v1091 = vmax.f32 %v1010, 0.0
        %v1092 = vmax.f32 %v901, 0.0
        %v1093 = vmax.f32 %v903, 0.0
        %v1094 = vmax.f32 %v1013, 0.0
        %v1095 = vmax.f32 %v907, 0.0
        %v1096 = vmax.f32 %v909, 0.0
        %v1097 = vmax.f32 %v1018, 0.0
        %v1098 = vmax.f32 %v911, 0.0
        %v1099 = vmax.f32 %v913, 0.0
        %v1100 = vmax.f32 %v1021, 0.0
        %v1101 = vmax.f32 %v917, 0.0
        %v1102 = vmax.f32 %v919, 0.0
        %v1103 = vmax.f32 %v1026, 0.0
        %v1104 = vmax.f32 %v921, 0.0
        %v1105 = vmax.f32 %v923, 0.0
        %v1106 = vmax.f32 %v1029, 0.0
        %v1107 = vmax.f32 %v927, 0.0
        %v1108 = vmax.f32 %v929, 0.0
        %v1109 = vmax.f32 %v1034, 0.0
        %v1110 = vmax.f32 %v931, 0.0
        %v1111 = vmax.f32 %v933, 0.0
        %v1112 = vmax.f32 %v1037, 0.0
        %v1113 = vmax.f32 %v937, 0.0
        %v1114 = vmax.f32 %v939, 0.0
        %v1115 = vmax.f32 %v1042, 0.0
        %v1116 = vmax.f32 %v941, 0.0
        %v1117 = vmax.f32 %v943, 0.0
        %v1118 = vmax.f32 %v1045, 0.0
        %v1119 = vmax.f32 %v947, 0.0
        %v1120 = vmax.f32 %v949, 0.0
        %v1121 = vmax.f32 %v1050, 0.0
        %v1122 = vmax.f32 %v951, 0.0
        %v1123 = vmax.f32 %v953, 0.0
        %v1124 = vmax.f32 %v1053, 0.0
        %v1125 = vmax.f32 %v957, 0.0
        %v1126 = vmax.f32 %v959, 0.0
        %v1127 = vmax.f32 %v1058, 0.0
        %v1128 = vmax.f32 %v961, 0.0
        %v1129 = vmax.f32 %v963, 0.0
        %v1130 = vmax.f32 %v1061, 0.0
        %v1131 = vmax.f32 %v967, 0.0
        %v1132 = vmax.f32 %v969, 0.0
        %v1133 = vmax.f32 %v1066, 0.0
        %v1134 = vmax.f32 %v971, 0.0
        %v1135 = vmax.f32 %v973, 0.0
        %v1136 = vmax.f32 %v1069, 0.0
        %v1137 = vsel %vm1086, %v1089, %v897
        %v1138 = vsel %vm1087, %v1090, %v899
        %v1139 = vsel %vm1088, %v1091, %v1010
        %v1140 = vsel %vm1086, %v1092, %v901
        %v1141 = vsel %vm1087, %v1093, %v903
        %v1142 = vsel %vm1088, %v1094, %v1013
        %v1143 = vsel %vm1086, %v1095, %v907
        %v1144 = vsel %vm1087, %v1096, %v909
        %v1145 = vsel %vm1088, %v1097, %v1018
        %v1146 = vsel %vm1086, %v1098, %v911
        %v1147 = vsel %vm1087, %v1099, %v913
        %v1148 = vsel %vm1088, %v1100, %v1021
        %v1149 = vsel %vm1086, %v1101, %v917
        %v1150 = vsel %vm1087, %v1102, %v919
        %v1151 = vsel %vm1088, %v1103, %v1026
        %v1152 = vsel %vm1086, %v1104, %v921
        %v1153 = vsel %vm1087, %v1105, %v923
        %v1154 = vsel %vm1088, %v1106, %v1029
        %v1155 = vsel %vm1086, %v1107, %v927
        %v1156 = vsel %vm1087, %v1108, %v929
        %v1157 = vsel %vm1088, %v1109, %v1034
        %v1158 = vsel %vm1086, %v1110, %v931
        %v1159 = vsel %vm1087, %v1111, %v933
        %v1160 = vsel %vm1088, %v1112, %v1037
        %v1161 = vsel %vm1086, %v1113, %v937
        %v1162 = vsel %vm1087, %v1114, %v939
        %v1163 = vsel %vm1088, %v1115, %v1042
        %v1164 = vsel %vm1086, %v1116, %v941
        %v1165 = vsel %vm1087, %v1117, %v943
        %v1166 = vsel %vm1088, %v1118, %v1045
        %v1167 = vsel %vm1086, %v1119, %v947
        %v1168 = vsel %vm1087, %v1120, %v949
        %v1169 = vsel %vm1088, %v1121, %v1050
        %v1170 = vsel %vm1086, %v1122, %v951
        %v1171 = vsel %vm1087, %v1123, %v953
        %v1172 = vsel %vm1088, %v1124, %v1053
        %v1173 = vsel %vm1086, %v1125, %v957
        %v1174 = vsel %vm1087, %v1126, %v959
        %v1175 = vsel %vm1088, %v1127, %v1058
        %v1176 = vsel %vm1086, %v1128, %v961
        %v1177 = vsel %vm1087, %v1129, %v963
        %v1178 = vsel %vm1088, %v1130, %v1061
        %v1179 = vsel %vm1086, %v1131, %v967
        %v1180 = vsel %vm1087, %v1132, %v969
        %v1181 = vsel %vm1088, %v1133, %v1066
        %v1182 = vsel %vm1086, %v1134, %v971
        %v1183 = vsel %vm1087, %v1135, %v973
        %v1184 = vsel %vm1088, %v1136, %v1069
        %1185 = vst [vmem:[%s137] sm:$0xff] %v1137
        %1186 = vst [vmem:[%s137 + $0x8] sm:$0xff] %v1138
        %1187 = vst [vmem:[%s137 + $0x10] sm:$0xff] %v1139
        %1188 = vst [vmem:[%s137 + $0x18] sm:$0xff] %v1140
        %1189 = vst [vmem:[%s137 + $0x20] sm:$0xff] %v1141
        %1190 = vst [vmem:[%s137 + $0x28] sm:$0xff] %v1142
        %1191 = vst [vmem:[%s137 + $0x30] sm:$0xff] %v1143
        %1192 = vst [vmem:[%s137 + $0x38] sm:$0xff] %v1144
        %1193 = vst [vmem:[%s137 + $0x40] sm:$0xff] %v1145
        %1194 = vst [vmem:[%s137 + $0x48] sm:$0xff] %v1146
        %1195 = vst [vmem:[%s137 + $0x50] sm:$0xff] %v1147
        %1196 = vst [vmem:[%s137 + $0x58] sm:$0xff] %v1148
        %1197 = vst [vmem:[%s137 + $0x60] sm:$0xff] %v1149
        %1198 = vst [vmem:[%s137 + $0x68] sm:$0xff] %v1150
        %1199 = vst [vmem:[%s137 + $0x70] sm:$0xff] %v1151
        %1200 = vst [vmem:[%s137 + $0x78] sm:$0xff] %v1152
        %1201 = vst [vmem:[%s137 + $0x80] sm:$0xff] %v1153
        %1202 = vst [vmem:[%s137 + $0x88] sm:$0xff] %v1154
        %1203 = vst [vmem:[%s137 + $0x90] sm:$0xff] %v1155
        %1204 = vst [vmem:[%s137 + $0x98] sm:$0xff] %v1156
        %1205 = vst [vmem:[%s137 + $0xa0] sm:$0xff] %v1157
        %1206 = vst [vmem:[%s137 + $0xa8] sm:$0xff] %v1158
        %1207 = vst [vmem:[%s137 + $0xb0] sm:$0xff] %v1159
        %1208 = vst [vmem:[%s137 + $0xb8] sm:$0xff] %v1160
        %1209 = vst [vmem:[%s137 + $0xc0] sm:$0xff] %v1161
        %1210 = vst [vmem:[%s137 + $0xc8] sm:$0xff] %v1162
        %1211 = vst [vmem:[%s137 + $0xd0] sm:$0xff] %v1163
        %1212 = vst [vmem:[%s137 + $0xd8] sm:$0xff] %v1164
        %1213 = vst [vmem:[%s137 + $0xe0] sm:$0xff] %v1165
        %1214 = vst [vmem:[%s137 + $0xe8] sm:$0xff] %v1166
        %1215 = vst [vmem:[%s137 + $0xf0] sm:$0xff] %v1167
        %1216 = vst [vmem:[%s137 + $0xf8] sm:$0xff] %v1168
        %1217 = vst [vmem:[%s137 + $0x100] sm:$0xff] %v1169
        %1218 = vst [vmem:[%s137 + $0x108] sm:$0xff] %v1170
        %1219 = vst [vmem:[%s137 + $0x110] sm:$0xff] %v1171
        %1220 = vst [vmem:[%s137 + $0x118] sm:$0xff] %v1172
        %1221 = vst [vmem:[%s137 + $0x120] sm:$0xff] %v1173
        %1222 = vst [vmem:[%s137 + $0x128] sm:$0xff] %v1174
        %1223 = vst [vmem:[%s137 + $0x130] sm:$0xff] %v1175
        %1224 = vst [vmem:[%s137 + $0x138] sm:$0xff] %v1176
        %1225 = vst [vmem:[%s137 + $0x140] sm:$0xff] %v1177
        %1226 = vst [vmem:[%s137 + $0x148] sm:$0xff] %v1178
        %1227 = vst [vmem:[%s137 + $0x150] sm:$0xff] %v1179
        %1228 = vst [vmem:[%s137 + $0x158] sm:$0xff] %v1180
        %1229 = vst [vmem:[%s137 + $0x160] sm:$0xff] %v1181
        %1230 = vst [vmem:[%s137 + $0x168] sm:$0xff] %v1182
        %1231 = vst [vmem:[%s137 + $0x170] sm:$0xff] %v1183
        %1232 = vst [vmem:[%s137 + $0x178] sm:$0xff] %v1184
        %s1233 = sand.u32 %s71, 1
        %s1234 = scalar_lea.sflag [#allocation3], %s1233
        %s1235 = sand.u32 %s71, 1
        %s1236 = smul.addr %s1235, 384
        %s1237 = scalar_lea.vmem [#allocation2], %s1236
        // Predicated region
        $region29: #{tpu_custom_call.1} parent=27 // pred_check
          %p1238 = pneg %p81
        $region30: #{tpu_custom_call.1} parent=27 // pred_check_branch
          %1240 = sbr.rel (%p1238) target = $region32
        $region31: #{tpu_custom_call.1} parent=27 // pred_region
          %s1241 = smul.u32 16, %s16
          %s1243 = ssub.s32 6144, 6144
          %1244 = vsyncadd %s1234, %s1243
          %s1245 = smul.addr %s1241, 3
          %s1246 = smul.addr %s1245, 128
          %s1247 = scalar_lea.hbm %s2, %s1246
          %s1248 = sshll.u32 %s1237, 4
          %s1249 = int_to_ptr.vmem [resolvable:$true] %s1248
          %1254 = dma.vmem_to_hbm [thread:$0]  %s1249, 6144, %s1247, %s1234, 384, 384, 24
        $region32: #{tpu_custom_call.1} parent=27 // pred_fallthru
          _
      $region28: #{tpu_custom_call.1} parent=5 // pred_fallthru
        _
      %p1255 = scmp.le.s32.totalorder 2, %s11
      // Predicated region
      $region33: #{tpu_custom_call.1} parent=5 // pred_check
        %p1256 = pneg %p1255
      $region34: #{tpu_custom_call.1} parent=5 // pred_check_branch
        %1258 = sbr.rel (%p1256) target = $region36
      $region35: #{tpu_custom_call.1} parent=5 // pred_region
        %s1259 = ssub.s32 %s11, 2
        // Predicated region
        $region37: #{tpu_custom_call.1} parent=35 // pred_check
          %p1260 = pneg %p87
        $region38: #{tpu_custom_call.1} parent=35 // pred_check_branch
          %1262 = sbr.rel (%p1260) target = $region40
        $region39: #{tpu_custom_call.1} parent=35 // pred_region
          %s1263 = sand.u32 %s72, 1
          %s1264 = scalar_lea.sflag [#allocation3], %s1263
          %s1265 = sand.u32 %s72, 1
          %s1266 = smul.addr %s1265, 384
          %s1267 = scalar_lea.vmem [#allocation2], %s1266
          %1268 = dma.done %s1264, 6144
        $region40: #{tpu_custom_call.1} parent=35 // pred_fallthru
          _
      $region36: #{tpu_custom_call.1} parent=5 // pred_fallthru
        _
    $region6: #{tpu_custom_call.1} parent=1 // loop_footer
      %s15 = sadd.s32 1, %s11
    $region7: #{tpu_custom_call.1} parent=1 // loop_footer_branch
      %10 = sbr.rel target = $region3
    $region8: #{tpu_custom_call.1} parent=1 // loop_exit
      _
    %1269 = vsyncpa [#allocation3], 1
    %s1270 = scalar_lea.sflag [#allocation3], 1
    %1271 = vsyncpa %s1270, 1

</llo_original>
